<compile_context>
chip_gen: v7x
topology: tpu7x:2x2x1
jax: 0.10.0
libtpu: 0.0.40
codegen_flags: <defaults>
</compile_context>

<pallas_src>
import functools
import math

import jax
import jax.numpy as jnp
from jax.experimental import pallas as pl
from jax.experimental.pallas import tpu as pltpu


# ---------------------------------------------------------------------------
# Parameter construction (glue, matches nn.Module.__init__ with exp_init=True)
# ---------------------------------------------------------------------------
def make_psn_params(order: int = 2):
    # exp_init: weight[order-1] = 1, weight[i] = weight[i+1] / 2
    w = [1.0] * order
    for i in range(order - 2, -1, -1):
        w[i] = w[i + 1] / 2.0
    weight_vec = jnp.asarray(w, dtype=jnp.float32)          # shape [order]
    threshold = jnp.asarray(-1.0, dtype=jnp.float32)        # scalar parameter
    return weight_vec, threshold


def gen_gemm_weight(weight_vec: jnp.ndarray, T: int, order: int) -> jnp.ndarray:
    """Vectorized build of the [T, T] banded temporal-mixing matrix.

    W[i, j] = weight[order - 1 - (i - j)]  for 0 <= i - j < order, else 0.
    (Used only by the pure-JAX reference; the kernel uses the tap form.)
    """
    i = jnp.arange(T)[:, None]
    j = jnp.arange(T)[None, :]
    d = i - j
    band = (d >= 0) & (d < order)
    idx = jnp.clip(order - 1 - d, 0, order - 1)
    return jnp.where(band, weight_vec[idx], 0.0).astype(weight_vec.dtype)


# ---------------------------------------------------------------------------
# Pallas kernel: banded tap form, h = sum_k w[order-1-k] * shift_T(x, k) + thr
# ---------------------------------------------------------------------------
def _psn_tap_kernel(w_ref, thr_ref, x_ref, o_ref, *, order: int):
    # w_ref: [order] f32 (SMEM), thr_ref: [1] f32 (SMEM)
    # x_ref / o_ref: [nb, T, tm] slab (batch-packed, lane-dense)
    x = x_ref[...].astype(jnp.float32)               # f32 accumulation
    T = x.shape[1]
    h = x * w_ref[order - 1]                          # tap k = 0
    for k in range(1, min(order, T)):                 # taps k = 1 .. order-1
        # shifted[:, t, :] = x[:, t-k, :] for t >= k, else 0 (sublane shift)
        pad = jnp.zeros(x.shape[:1] + (k,) + x.shape[2:], jnp.float32)
        shifted = jnp.concatenate([pad, x[:, : T - k, :]], axis=1)
        h = h + w_ref[order - 1 - k] * shifted
    o_ref[...] = ((h + thr_ref[0]) >= 0.0).astype(o_ref.dtype)


# ---------------------------------------------------------------------------
# Tiling selection (generation-aware)
# ---------------------------------------------------------------------------
def _vmem_capacity_bytes() -> int:
    try:
        return int(pltpu.get_tpu_info().vmem_capacity_bytes)
    except Exception:
        return 64 * 1024 * 1024          # conservative fallback (v7x-sized)


def _choose_tiling(N: int, T: int, M: int, in_itemsize: int, max_tile_bytes: int):
    """Pick (nb, tm) so each input slab is ~max_tile_bytes and lane-dense."""
    elems_budget = max(128, max_tile_bytes // (in_itemsize * T))    # nb * tm
    if M <= elems_budget:
        tm = M                                   # full lane dim (no 128 rule)
        nb_cap = max(1, min(N, elems_budget // max(M, 1)))
        nb = max(d for d in range(1, nb_cap + 1) if N % d == 0)
    else:
        nb = 1
        cap = (elems_budget // 128) * 128
        tm = 0
        for cand in range(cap, 127, -128):       # prefer a divisor of M
            if M % cand == 0:                    # -> unmasked, lane-dense stores
                tm = cand
                break
        if tm == 0:
            tm = cap                             # ragged tail -> masked stores
    grid_n, grid_m = N // nb, pl.cdiv(M, tm)

    # Keep >= 2 grid steps when possible so v7x megacore can use both TCs.
    if grid_n * grid_m < 2:
        if N >= 2:
            nb = max(d for d in range(1, N // 2 + 1) if N % d == 0)
            grid_n = N // nb
        elif M >= 256:
            tm = ((M + 1) // 2 + 127) // 128 * 128
            grid_m = pl.cdiv(M, tm)
    return nb, tm, grid_n, grid_m


# ---------------------------------------------------------------------------
# Wrapper
# ---------------------------------------------------------------------------
def masked_sliding_psn(x_seq: jnp.ndarray,
                       weight_vec: jnp.ndarray,
                       threshold: jnp.ndarray,
                       order: int = 2,
                       out_dtype=jnp.bfloat16,
                       max_tile_bytes: int | None = None) -> jnp.ndarray:
    """Forward pass of MaskedSlidingPSN.

    x_seq: [N, T, C, H, W] (f32 or bf16; time at dim 1, as in PyTorch).
    Returns spikes (exactly 0/1) with the same shape, in `out_dtype`
    (bf16 by default — exactly representable, and the kernel is HBM-bound so
    the narrow store is a ~25% traffic cut; pass out_dtype=x_seq.dtype if a
    downstream consumer requires the original dtype).
    """
    assert order >= 1
    N, T = x_seq.shape[0], x_seq.shape[1]
    M = math.prod(x_seq.shape[2:]) if x_seq.ndim > 2 else 1

    # Free trailing-dim collapse: [N, T, C, H, W] -> [N, T, M]; no HBM copy.
    x3 = x_seq.reshape(N, T, M)

    vmem_cap = _vmem_capacity_bytes()
    if max_tile_bytes is None:
        # ~4 MiB slabs on v7x (64 MiB VMEM), ~8 MiB on v5e/v6e (128 MiB VMEM)
        max_tile_bytes = max(1 << 20, min(8 << 20, vmem_cap // 16))
    in_itemsize = x3.dtype.itemsize
    out_itemsize = jnp.dtype(out_dtype).itemsize
    nb, tm, grid_n, grid_m = _choose_tiling(N, T, M, in_itemsize, max_tile_bytes)

    in_tile_bytes = nb * T * tm * in_itemsize
    out_tile_bytes = nb * T * tm * out_itemsize
    vmem_limit = int(min(vmem_cap * 3 // 4,
                         max(32 << 20, 3 * (in_tile_bytes + out_tile_bytes))))

    w_vec = jnp.asarray(weight_vec, jnp.float32).reshape(order)   # SMEM taps
    thr = jnp.asarray(threshold, jnp.float32).reshape(1)          # SMEM scalar

    kernel = functools.partial(_psn_tap_kernel, order=order)

    cost = pl.CostEstimate(
        flops=2 * min(order, T) * N * T * M,
        bytes_accessed=N * T * M * (in_itemsize + out_itemsize),
        transcendentals=0)

    out = pl.pallas_call(
        kernel,
        out_shape=jax.ShapeDtypeStruct((N, T, M), out_dtype),
        grid_spec=pltpu.PrefetchScalarGridSpec(
            num_scalar_prefetch=0,
            grid=(grid_n, grid_m),
            in_specs=[
                # order-length tap weights + threshold: untiled SMEM scalars
                pl.BlockSpec(memory_space=pltpu.MemorySpace.SMEM),
                pl.BlockSpec(memory_space=pltpu.MemorySpace.SMEM),
                # activations: nb batch elements, all T, a wide lane tile
                pl.BlockSpec((nb, T, tm), lambda n, i: (n, 0, i)),
            ],
            out_specs=pl.BlockSpec((nb, T, tm), lambda n, i: (n, 0, i)),
        ),
        compiler_params=pltpu.CompilerParams(
            dimension_semantics=("parallel", "parallel"),
            vmem_limit_bytes=vmem_limit),
        cost_estimate=cost,
    )(w_vec, thr, x3)

    # Free trailing-dim expansion back to the original layout.
    return out.reshape(x_seq.shape)


# ---------------------------------------------------------------------------
# Pure-JAX reference (mirrors the PyTorch forward) for validation.
# Uses an explicit broadcast-sum of the banded [T,T] matrix so the check is
# bit-exact f32 (avoids TPU matmul default-precision noise near h == 0).
# ---------------------------------------------------------------------------
def masked_sliding_psn_ref(x_seq, weight_vec, threshold, order=2):
    x = x_seq.astype(jnp.float32)
    N, T = x.shape[0], x.shape[1]
    Wmat = gen_gemm_weight(jnp.asarray(weight_vec, jnp.float32), T, order)
    xf = x.reshape(N, T, -1)                                     # [N, T, M]
    h = jnp.sum(Wmat[None, :, :, None] * xf[:, None, :, :], axis=2) + threshold
    out = (h >= 0.0).astype(jnp.float32)
    # TODO(synk): only the ATan surrogate *forward* (heaviside) is implemented;
    # the surrogate gradient is a training-time autograd detail.
    return out.reshape(x_seq.shape)


if __name__ == "__main__":
    key = jax.random.PRNGKey(0)
    order = 2
    weight_vec, threshold = make_psn_params(order)

    # Test 1: canonical small shape (batch=2, T=8, C=4, 16x16)
    x1 = jax.random.normal(jax.random.fold_in(key, 0), (2, 8, 4, 16, 16), jnp.float32)
    out1 = jax.block_until_ready(masked_sliding_psn(x1, weight_vec, threshold, order=order))
    ref1 = masked_sliding_psn_ref(x1, weight_vec, threshold, order=order)
    assert out1.shape == x1.shape and out1.dtype == jnp.bfloat16
    assert jnp.array_equal(out1.astype(jnp.float32), ref1), "mismatch (test 1)"

    # Test 2: odd batch, M = 3*10*20 = 600 (not a multiple of 128), full-lane block
    x2 = jax.random.normal(jax.random.fold_in(key, 1), (3, 8, 3, 10, 20), jnp.float32)
    ref2 = masked_sliding_psn_ref(x2, weight_vec, threshold, order=order)
    out2 = jax.block_until_ready(masked_sliding_psn(x2, weight_vec, threshold, order=order))
    assert jnp.array_equal(out2.astype(jnp.float32), ref2), "mismatch (test 2)"

    # Test 3: force a ragged lane tiling (tm=256 over M=600) to exercise masked tails
    out3 = jax.block_until_ready(masked_sliding_psn(
        x2, weight_vec, threshold, order=order, max_tile_bytes=8192))
    assert jnp.array_equal(out3.astype(jnp.float32), ref2), "mismatch (test 3)"

    # Test 4: bf16 activations (read traffic halves; accumulation stays f32)
    x1b = x1.astype(jnp.bfloat16)
    out4 = jax.block_until_ready(masked_sliding_psn(x1b, weight_vec, threshold, order=order))
    ref4 = masked_sliding_psn_ref(x1b, weight_vec, threshold, order=order)
    assert jnp.array_equal(out4.astype(jnp.float32), ref4), "mismatch (test 4)"

    print("KERNEL_OK")
</pallas_src>

<mosaic_0001>
module attributes {stable_mosaic.version = 11 : i64} {
  func.func @_psn_tap_kernel(%arg0: i32, %arg1: i32, %arg2: memref<2xf32, #tpu.memory_space<smem>>, %arg3: memref<1xf32, #tpu.memory_space<smem>>, %arg4: memref<1x8x1024xf32, #tpu.memory_space<vmem>>, %arg5: memref<1x8x1024xbf16, #tpu.memory_space<vmem>>) attributes {dimension_semantics = [#tpu.dimension_semantics<parallel>, #tpu.dimension_semantics<parallel>], iteration_bounds = array<i64: 2, 1>, scalar_prefetch = 0 : i64, scratch_operands = 0 : i64, tpu.core_type = #tpu.core_type<tc>, window_params = [{transform_indices = @transform_0, window_bounds = array<i64: 2>}, {transform_indices = @transform_1, window_bounds = array<i64: 1>}, {transform_indices = @transform_2, window_bounds = array<i64: 1, 8, 1024>}, {transform_indices = @transform_3, window_bounds = array<i64: 1, 8, 1024>}]} {
    %c0 = arith.constant 0 : index
    %c0_0 = arith.constant 0 : index
    %c0_1 = arith.constant 0 : index
    %0 = vector.load %arg4[%c0, %c0_0, %c0_1] : memref<1x8x1024xf32, #tpu.memory_space<vmem>>, vector<1x8x1024xf32>
    %c1 = arith.constant 1 : index
    %1 = memref.load %arg2[%c1] : memref<2xf32, #tpu.memory_space<smem>>
    %2 = vector.broadcast %1 : f32 to vector<1x8x1024xf32>
    %3 = arith.mulf %0, %2 : vector<1x8x1024xf32>
    %cst = arith.constant 0.000000e+00 : f32
    %4 = vector.broadcast %cst : f32 to vector<1x1x1024xf32>
    %5 = vector.extract_strided_slice %0 {offsets = [0, 0, 0], sizes = [1, 7, 1024], strides = [1, 1, 1]} : vector<1x8x1024xf32> to vector<1x7x1024xf32>
    %6 = tpu.concatenate %4, %5 in 1 : vector<1x1x1024xf32>, vector<1x7x1024xf32> -> vector<1x8x1024xf32>
    %c0_2 = arith.constant 0 : index
    %7 = memref.load %arg2[%c0_2] : memref<2xf32, #tpu.memory_space<smem>>
    %8 = vector.broadcast %7 : f32 to vector<1x8x1024xf32>
    %9 = arith.mulf %8, %6 : vector<1x8x1024xf32>
    %10 = arith.addf %3, %9 : vector<1x8x1024xf32>
    %c0_3 = arith.constant 0 : index
    %11 = memref.load %arg3[%c0_3] : memref<1xf32, #tpu.memory_space<smem>>
    %12 = vector.broadcast %11 : f32 to vector<1x8x1024xf32>
    %13 = arith.addf %10, %12 : vector<1x8x1024xf32>
    %cst_4 = arith.constant 0.000000e+00 : f32
    %14 = vector.broadcast %cst_4 : f32 to vector<1x8x1024xf32>
    %15 = arith.cmpf oge, %13, %14 : vector<1x8x1024xf32>
    %16 = arith.extui %15 : vector<1x8x1024xi1> to vector<1x8x1024xi32>
    %17 = arith.sitofp %16 : vector<1x8x1024xi32> to vector<1x8x1024xf32>
    %18 = arith.truncf %17 : vector<1x8x1024xf32> to vector<1x8x1024xbf16>
    %c0_5 = arith.constant 0 : index
    %c0_6 = arith.constant 0 : index
    %c0_7 = arith.constant 0 : index
    %19 = vector.load %arg5[%c0_5, %c0_6, %c0_7] : memref<1x8x1024xbf16, #tpu.memory_space<vmem>>, vector<1x8x1024xbf16>
    tpu.vector_store %arg5[%c0_5, %c0_6, %c0_7], %18 {strides = array<i32>} : memref<1x8x1024xbf16, #tpu.memory_space<vmem>>, vector<1x8x1024xbf16>,
    return
  }
  func.func @transform_0(%arg0: i32, %arg1: i32) -> i32 {
    %c0_i32 = arith.constant 0 : i32
    %c0_i32_0 = arith.constant 0 : i32
    return %c0_i32 : i32
  }
  func.func @transform_1(%arg0: i32, %arg1: i32) -> i32 {
    %c0_i32 = arith.constant 0 : i32
    %c0_i32_0 = arith.constant 0 : i32
    return %c0_i32 : i32
  }
  func.func @transform_2(%arg0: i32, %arg1: i32) -> (i32, i32, i32) {
    %c0_i32 = arith.constant 0 : i32
    %c0_i32_0 = arith.constant 0 : i32
    return %arg0, %c0_i32, %arg1 : i32, i32, i32
  }
  func.func @transform_3(%arg0: i32, %arg1: i32) -> (i32, i32, i32) {
    %c0_i32 = arith.constant 0 : i32
    %c0_i32_0 = arith.constant 0 : i32
    return %arg0, %c0_i32, %arg1 : i32, i32, i32
  }
}

</mosaic_0001>

<llo_original>
// kernel: tpu_custom_call.1
$region0: #{tpu_custom_call.1}
  #allocation0 [shape = 'u32[]', space=smem, size = 0x4, offset = 0x4, fixed_abs, tag = 'smem constant byte address 0x4 - core index']
  #allocation1 [shape = 'u32[144,128]{1,0:T(1,128)}', space=vmem, size = 0x12000, scoped, tag = 'internal scratch']
  #allocation2 [shape = 'f32[1]{0:T(128)S(6)}', space=smem, size = 0x200, scoped, tag = 'scoped memory for tpu_custom_call.1']
  %s0 = inlined_call_operand.vmem [shape: f32[2], index: 0, kind: input, shape index: {}]
  %s1 = inlined_call_operand.<no memory space> [shape: f32[1], index: 1, kind: input, shape index: {}]
  %s2 = inlined_call_operand.hbm [shape: f32[2,8,1024], index: 2, kind: input, shape index: {}]
  %s3 = inlined_call_operand.hbm [shape: bf16[2,8,1024], index: 3, kind: output, shape index: {}]
  %s4 = sld [smem:[#allocation0]]
  $region53: #{tpu_custom_call.1} parent=0
    _
  %s6 = ssub.s32 1, %s4
  %s7 = scalar_select 0, %s6, %s4
  %8 = sst [smem:[#allocation2]] %s1
  $region1: #{tpu_custom_call.1} parent=0
    #allocation3 [shape = 'u8[512]{0}', space=smem, size = 0x200, scoped, tag = 'input window, operand 0, single buffered']
    #allocation4 [shape = 's32[2]{0}', space=sflag, size = 0x8, scoped, tag = 'scoped memory for tpu_custom_call.1']
    #allocation5 [shape = 's32[2]{0}', space=sflag, size = 0x8, scoped, tag = 'scoped memory for tpu_custom_call.1']
    #allocation6 [shape = 's32[2]{0}', space=sflag, size = 0x8, scoped, tag = 'scoped memory for tpu_custom_call.1']
    #allocation7 [shape = 'u8[65536]{0}', space=vmem, size = 0x10000, scoped, tag = 'input window, operand 2']
    #allocation8 [shape = 'u8[32768]{0}', space=vmem, size = 0x8000, scoped, tag = 'output window, operand 0']
    %9 = vsyncpa [#allocation6], 0
    %10 = vsyncpa [#allocation4], 0
    %s11 = scalar_lea.sflag [#allocation4], 1
    %12 = vsyncpa %s11, 0
    %13 = vsyncpa [#allocation5], 0
    %s14 = scalar_lea.sflag [#allocation5], 1
    %15 = vsyncpa %s14, 0
    loop: start=0, step=1, limit=4
    $region2: #{tpu_custom_call.1} parent=1 // loop_pre_header
      _
    $region3: #{tpu_custom_call.1} parent=1 // loop_header
      %s17 = sphi 0, %s21
      %p18 = scmp.ge.s32.totalorder %s17, 4
      %s24 = sphi 0, %s36
      %s25 = sphi 0, %s32
      %s26 = sphi 0, %s24
      %s27 = sphi 0, %s25
      %s28 = sphi 0, %s26
      %s29 = sphi 0, %s27
      %s37 = sphi 0, %s37
      %s39 = sphi 0, %s37
      %s40 = sphi 0, %s39
      %s54 = sphi 0, %s40
      %s58 = sphi 0, %s58
      %s60 = sphi 0, %s58
      %s61 = sphi 0, %s60
      %s75 = sphi 0, %s61
      %s83 = sphi 0, %s85
      %s86 = sphi 0, %s83
      %s87 = sphi 0, %s86
      %s103 = sphi 0, %s87
      %s111 = sphi 0, %s113
      %s114 = sphi 0, %s111
      %s115 = sphi 0, %s114
      %s131 = sphi 0, %s115
    $region4: #{tpu_custom_call.1} parent=1 // loop_header_branch
      %20 = sbr.rel (%p18) target = $region8
    $region5: #{tpu_custom_call.1} parent=1 // loop_body
      %s22 = ssub.s32 %s17, 1
      %s23 = ssub.s32 %s17, 2
      %s30 = sadd.s32 1, %s25
      %p31 = scmp.ge.s32.totalorder %s30, 1
      %s32 = scalar_select %p31, 0, %s30
      %s33 = sadd.s32 1, %s24
      %s34 = scalar_select %p31, %s33, %s24
      %p35 = scmp.ge.s32.totalorder %s34, 2
      %s36 = scalar_select %p35, 0, %s34
      %s38 = sadd.s32 %s37, 1
      %p41 = scmp.eq.s32.totalorder %s17, 1
      %p42 = scmp.ne.s32.totalorder %s37, %s39
      %p43 = scmp.eq.s32.totalorder %s17, 0
      %p44 = por %p42, %p43
      %p45 = scmp.ne.s32.totalorder %s37, %s39
      %p46 = scmp.eq.s32.totalorder %s22, 1
      %p47 = por %p45, %p46
      %p48 = scmp.ne.s32.totalorder %s39, %s40
      %p49 = scmp.eq.s32.totalorder %s22, 0
      %p50 = por %p48, %p49
      %p51 = scmp.ne.s32.totalorder %s39, %s40
      %p52 = scmp.eq.s32.totalorder %s23, 1
      %p53 = por %p51, %p52
      %p55 = scmp.ne.s32.totalorder %s40, %s54
      %p56 = scmp.eq.s32.totalorder %s23, 0
      %p57 = por %p55, %p56
      %s59 = sadd.s32 %s58, 1
      %p62 = scmp.eq.s32.totalorder %s17, 1
      %p63 = scmp.ne.s32.totalorder %s58, %s60
      %p64 = scmp.eq.s32.totalorder %s17, 0
      %p65 = por %p63, %p64
      %p66 = scmp.ne.s32.totalorder %s58, %s60
      %p67 = scmp.eq.s32.totalorder %s22, 1
      %p68 = por %p66, %p67
      %p69 = scmp.ne.s32.totalorder %s60, %s61
      %p70 = scmp.eq.s32.totalorder %s22, 0
      %p71 = por %p69, %p70
      %p72 = scmp.ne.s32.totalorder %s60, %s61
      %p73 = scmp.eq.s32.totalorder %s23, 1
      %p74 = por %p72, %p73
      %p76 = scmp.ne.s32.totalorder %s61, %s75
      %p77 = scmp.eq.s32.totalorder %s23, 0
      %p78 = por %p76, %p77
      %s79 = ssub.s32 %s24, %s36
      %s80 = ssub.s32 %s25, %s32
      %s81 = sor.u32 %s79, %s80
      %p82 = scmp.eq.s32.totalorder %s81, 0
      %s84 = sadd.s32 %s83, 1
      %s85 = scalar_select %p82, %s83, %s84
      %p88 = pneg %p82
      %p89 = scmp.eq.s32.totalorder %s17, 1
      %p90 = por %p88, %p89
      %p91 = scmp.ne.s32.totalorder %s83, %s86
      %p92 = scmp.eq.s32.totalorder %s17, 0
      %p93 = por %p91, %p92
      %p94 = scmp.ne.s32.totalorder %s83, %s86
      %p95 = scmp.eq.s32.totalorder %s22, 1
      %p96 = por %p94, %p95
      %p97 = scmp.ne.s32.totalorder %s86, %s87
      %p98 = scmp.eq.s32.totalorder %s22, 0
      %p99 = por %p97, %p98
      %p100 = scmp.ne.s32.totalorder %s86, %s87
      %p101 = scmp.eq.s32.totalorder %s23, 1
      %p102 = por %p100, %p101
      %p104 = scmp.ne.s32.totalorder %s87, %s103
      %p105 = scmp.eq.s32.totalorder %s23, 0
      %p106 = por %p104, %p105
      %s107 = ssub.s32 %s24, %s36
      %s108 = ssub.s32 %s25, %s32
      %s109 = sor.u32 %s107, %s108
      %p110 = scmp.eq.s32.totalorder %s109, 0
      %s112 = sadd.s32 %s111, 1
      %s113 = scalar_select %p110, %s111, %s112
      %p116 = pneg %p110
      %p117 = scmp.eq.s32.totalorder %s17, 1
      %p118 = por %p116, %p117
      %p119 = scmp.ne.s32.totalorder %s111, %s114
      %p120 = scmp.eq.s32.totalorder %s17, 0
      %p121 = por %p119, %p120
      %p122 = scmp.ne.s32.totalorder %s111, %s114
      %p123 = scmp.eq.s32.totalorder %s22, 1
      %p124 = por %p122, %p123
      %p125 = scmp.ne.s32.totalorder %s114, %s115
      %p126 = scmp.eq.s32.totalorder %s22, 0
      %p127 = por %p125, %p126
      %p128 = scmp.ne.s32.totalorder %s114, %s115
      %p129 = scmp.eq.s32.totalorder %s23, 1
      %p130 = por %p128, %p129
      %p132 = scmp.ne.s32.totalorder %s115, %s131
      %p133 = scmp.eq.s32.totalorder %s23, 0
      %p134 = por %p132, %p133
      %p135 = scmp.le.s32.totalorder 1, %s17
      %p136 = scmp.lt.s32.totalorder %s17, 3
      %p137 = pnand %p135, %p136
      %p138 = pneg %p137
      // Predicated region
      $region9: #{tpu_custom_call.1} parent=5 // pred_check
        _
      $region10: #{tpu_custom_call.1} parent=5 // pred_check_branch
        %140 = sbr.rel (%p137) target = $region12
      $region11: #{tpu_custom_call.1} parent=5 // pred_region
        %s141 = ssub.s32 %s17, 1
        // Predicated region
        $region13: #{tpu_custom_call.1} parent=11 // pred_check
          %p142 = pneg %p50
        $region14: #{tpu_custom_call.1} parent=11 // pred_check_branch
          %144 = sbr.rel (%p142) target = $region16
        $region15: #{tpu_custom_call.1} parent=11 // pred_region
          %s146 = ssub.s32 16, 16
          %147 = vsyncadd [#allocation6], %s146
          %s149 = sshll.u32 %s0, 4
          %s150 = int_to_ptr.vmem [resolvable:$true] %s149
          %152 = dma.vmem_to_smem %s150, 16, [#allocation3], [#allocation6]
        $region16: #{tpu_custom_call.1} parent=11 // pred_fallthru
          _
        // Predicated region
        $region17: #{tpu_custom_call.1} parent=11 // pred_check
          %p153 = pneg %p71
        $region18: #{tpu_custom_call.1} parent=11 // pred_check_branch
          %155 = sbr.rel (%p153) target = $region20
        $region19: #{tpu_custom_call.1} parent=11 // pred_region
          _
        $region20: #{tpu_custom_call.1} parent=11 // pred_fallthru
          _
      $region12: #{tpu_custom_call.1} parent=5 // pred_fallthru
        _
      %p156 = scmp.lt.s32.totalorder %s17, 2
      // Predicated region
      $region21: #{tpu_custom_call.1} parent=5 // pred_check
        %p157 = pneg %p156
      $region22: #{tpu_custom_call.1} parent=5 // pred_check_branch
        %159 = sbr.rel (%p157) target = $region24
      $region23: #{tpu_custom_call.1} parent=5 // pred_region
        // Predicated region
        $region25: #{tpu_custom_call.1} parent=23 // pred_check
          %p160 = pneg %p93
        $region26: #{tpu_custom_call.1} parent=23 // pred_check_branch
          %162 = sbr.rel (%p160) target = $region28
        $region27: #{tpu_custom_call.1} parent=23 // pred_region
          %s163 = sand.u32 %s83, 1
          %s164 = scalar_lea.sflag [#allocation4], %s163
          %s165 = sand.u32 %s83, 1
          %s166 = smul.addr %s165, 64
          %s167 = scalar_lea.vmem [#allocation7], %s166
          %s168 = smul.u32 8, %s25
          %s170 = ssub.s32 1024, 1024
          %171 = vsyncadd %s164, %s170
          %s172 = smul.addr %s24, 8
          %s173 = sadd.s32 %s168, %s172
          %s174 = smul.addr %s173, 128
          %s175 = scalar_lea.hbm %s2, %s174
          %s177 = sshll.u32 %s167, 4
          %s178 = int_to_ptr.vmem [resolvable:$true] %s177
          %180 = dma.hbm_to_vmem [thread:$0]  %s175, 1024, %s178, %s164
        $region28: #{tpu_custom_call.1} parent=23 // pred_fallthru
          _
      $region24: #{tpu_custom_call.1} parent=5 // pred_fallthru
        _
      %p181 = scmp.le.s32.totalorder 1, %s17
      %p182 = scmp.lt.s32.totalorder %s17, 3
      %p183 = pnand %p181, %p182
      %p184 = pneg %p183
      // Predicated region
      $region29: #{tpu_custom_call.1} parent=5 // pred_check
        _
      $region30: #{tpu_custom_call.1} parent=5 // pred_check_branch
        %186 = sbr.rel (%p183) target = $region32
      $region31: #{tpu_custom_call.1} parent=5 // pred_region
        %s187 = ssub.s32 %s17, 1
        // Predicated region
        $region33: #{tpu_custom_call.1} parent=31 // pred_check
          %p188 = pneg %p50
        $region34: #{tpu_custom_call.1} parent=31 // pred_check_branch
          %190 = sbr.rel (%p188) target = $region36
        $region35: #{tpu_custom_call.1} parent=31 // pred_region
          %191 = dma.done [#allocation6], 16
        $region36: #{tpu_custom_call.1} parent=31 // pred_fallthru
          _
        %s192 = sand.u32 %s86, 1
        %s193 = scalar_lea.sflag [#allocation4], %s192
        %s194 = sand.u32 %s86, 1
        %s195 = smul.addr %s194, 64
        %s196 = scalar_lea.vmem [#allocation7], %s195
        // Predicated region
        $region37: #{tpu_custom_call.1} parent=31 // pred_check
          %p197 = pneg %p99
        $region38: #{tpu_custom_call.1} parent=31 // pred_check_branch
          %199 = sbr.rel (%p197) target = $region40
        $region39: #{tpu_custom_call.1} parent=31 // pred_region
          %200 = dma.done %s193, 1024
        $region40: #{tpu_custom_call.1} parent=31 // pred_fallthru
          _
        %201 = sfence
        %p202 = pneg %p50
        %p203 = pneg %p47
        %p204 = pneg %p71
        %p205 = pneg %p68
        %s206 = sand.u32 %s86, 1
        %s207 = scalar_lea.sflag [#allocation4], %s206
        %s208 = sand.u32 %s86, 1
        %s209 = smul.addr %s208, 64
        %s210 = scalar_lea.vmem [#allocation7], %s209
        %p211 = pneg %p99
        %p212 = pneg %p96
        %p213 = pneg %p127
        %p214 = pneg %p124
        %s215 = sand.u32 %s114, 1
        %s216 = scalar_lea.sflag [#allocation5], %s215
        %s217 = sand.u32 %s114, 1
        %s218 = smul.addr %s217, 32
        %s219 = scalar_lea.vmem [#allocation8], %s218
        %s220 = smul.u32 8, %s27
        %s221 = smul.u32 8, %s27
        %v222 = vld [vmem:[%s196] sm:$0xff]
        %v223 = vld [vmem:[%s196 + $0x8] sm:$0xff]
        %v224 = vld [vmem:[%s196 + $0x10] sm:$0xff]
        %v225 = vld [vmem:[%s196 + $0x18] sm:$0xff]
        %v226 = vld [vmem:[%s196 + $0x20] sm:$0xff]
        %v227 = vld [vmem:[%s196 + $0x28] sm:$0xff]
        %v228 = vld [vmem:[%s196 + $0x30] sm:$0xff]
        %v229 = vld [vmem:[%s196 + $0x38] sm:$0xff]
        %s230 = sld [smem:[#allocation3 + $0x1]]
        %v231 = vstv %s230
        %v232 = vmul.f32 %v222, %v231
        %v233 = vmul.f32 %v223, %v231
        %v234 = vmul.f32 %v224, %v231
        %v235 = vmul.f32 %v225, %v231
        %v236 = vmul.f32 %v226, %v231
        %v237 = vmul.f32 %v227, %v231
        %v238 = vmul.f32 %v228, %v231
        %v239 = vmul.f32 %v229, %v231
        %v248 = vrot.slane %v222, 7
        %v249 = vrot.slane %v223, 7
        %v250 = vrot.slane %v224, 7
        %v251 = vrot.slane %v225, 7
        %v252 = vrot.slane %v226, 7
        %v253 = vrot.slane %v227, 7
        %v254 = vrot.slane %v228, 7
        %v255 = vrot.slane %v229, 7
        %vm264 = vcmask 1040384
        %v265 = vsel %vm264, 0.0, %v248
        %v266 = vsel %vm264, 0.0, %v249
        %v267 = vsel %vm264, 0.0, %v250
        %v268 = vsel %vm264, 0.0, %v251
        %v269 = vsel %vm264, 0.0, %v252
        %v270 = vsel %vm264, 0.0, %v253
        %v271 = vsel %vm264, 0.0, %v254
        %v272 = vsel %vm264, 0.0, %v255
        %s273 = sld [smem:[#allocation3]]
        %v274 = vstv %s273
        %v275 = vmul.f32 %v274, %v265
        %v276 = vmul.f32 %v274, %v266
        %v277 = vmul.f32 %v274, %v267
        %v278 = vmul.f32 %v274, %v268
        %v279 = vmul.f32 %v274, %v269
        %v280 = vmul.f32 %v274, %v270
        %v281 = vmul.f32 %v274, %v271
        %v282 = vmul.f32 %v274, %v272
        %v283 = vadd.f32 %v232, %v275
        %v284 = vadd.f32 %v233, %v276
        %v285 = vadd.f32 %v234, %v277
        %v286 = vadd.f32 %v235, %v278
        %v287 = vadd.f32 %v236, %v279
        %v288 = vadd.f32 %v237, %v280
        %v289 = vadd.f32 %v238, %v281
        %v290 = vadd.f32 %v239, %v282
        %s291 = sld [smem:[#allocation2]]
        %v292 = vstv %s291
        %v293 = vadd.f32 %v283, %v292
        %v294 = vadd.f32 %v284, %v292
        %v295 = vadd.f32 %v285, %v292
        %v296 = vadd.f32 %v286, %v292
        %v297 = vadd.f32 %v287, %v292
        %v298 = vadd.f32 %v288, %v292
        %v299 = vadd.f32 %v289, %v292
        %v300 = vadd.f32 %v290, %v292
        %vm301 = vcmp.ge.f32.partialorder %v293, 0.0
        %vm302 = vcmp.ge.f32.partialorder %v294, 0.0
        %vm303 = vcmp.ge.f32.partialorder %v295, 0.0
        %vm304 = vcmp.ge.f32.partialorder %v296, 0.0
        %vm305 = vcmp.ge.f32.partialorder %v297, 0.0
        %vm306 = vcmp.ge.f32.partialorder %v298, 0.0
        %vm307 = vcmp.ge.f32.partialorder %v299, 0.0
        %vm308 = vcmp.ge.f32.partialorder %v300, 0.0
        %v309 = vsel %vm301, 1, 0
        %v310 = vsel %vm302, 1, 0
        %v311 = vsel %vm303, 1, 0
        %v312 = vsel %vm304, 1, 0
        %v313 = vsel %vm305, 1, 0
        %v314 = vsel %vm306, 1, 0
        %v315 = vsel %vm307, 1, 0
        %v316 = vsel %vm308, 1, 0
        %v317 = vcvt.s32.f32 %v309
        %v318 = vcvt.s32.f32 %v310
        %v319 = vcvt.s32.f32 %v311
        %v320 = vcvt.s32.f32 %v312
        %v321 = vcvt.s32.f32 %v313
        %v322 = vcvt.s32.f32 %v314
        %v323 = vcvt.s32.f32 %v315
        %v324 = vcvt.s32.f32 %v316
        %v325 = vpack.c.bf16 %v317, %v317
        %v326 = vpack.c.bf16 %v318, %v318
        %v327 = vpack.c.bf16 %v319, %v319
        %v328 = vpack.c.bf16 %v320, %v320
        %v329 = vpack.c.bf16 %v321, %v321
        %v330 = vpack.c.bf16 %v322, %v322
        %v331 = vpack.c.bf16 %v323, %v323
        %v332 = vpack.c.bf16 %v324, %v324
        %v341 = vunpack.c.l.b16 %v325
        %v342 = vunpack.c.l.b16 %v326
        %v343 = vunpack.c.l.b16 %v327
        %v344 = vunpack.c.l.b16 %v328
        %v345 = vunpack.c.l.b16 %v329
        %v346 = vunpack.c.l.b16 %v330
        %v347 = vunpack.c.l.b16 %v331
        %v348 = vunpack.c.l.b16 %v332
        %v349 = vpack.c.b16 %v342, %v341
        %v350 = vpack.c.b16 %v344, %v343
        %v351 = vpack.c.b16 %v346, %v345
        %v352 = vpack.c.b16 %v348, %v347
        %357 = vst [vmem:[%s219] sm:$0xff] %v349
        %358 = vst [vmem:[%s219 + $0x8] sm:$0xff] %v350
        %359 = vst [vmem:[%s219 + $0x10] sm:$0xff] %v351
        %360 = vst [vmem:[%s219 + $0x18] sm:$0xff] %v352
        %s361 = sand.u32 %s114, 1
        %s362 = scalar_lea.sflag [#allocation5], %s361
        %s363 = sand.u32 %s114, 1
        %s364 = smul.addr %s363, 32
        %s365 = scalar_lea.vmem [#allocation8], %s364
        // Predicated region
        $region41: #{tpu_custom_call.1} parent=31 // pred_check
          %p366 = pneg %p124
        $region42: #{tpu_custom_call.1} parent=31 // pred_check_branch
          %368 = sbr.rel (%p366) target = $region44
        $region43: #{tpu_custom_call.1} parent=31 // pred_region
          %s369 = smul.u32 8, %s27
          %s371 = ssub.s32 512, 512
          %372 = vsyncadd %s362, %s371
          %s373 = smul.addr %s26, 8
          %s374 = sadd.s32 %s369, %s373
          %s375 = smul.addr %s374, 64
          %s376 = scalar_lea.hbm %s3, %s375
          %s378 = sshll.u32 %s365, 4
          %s379 = int_to_ptr.vmem [resolvable:$true] %s378
          %381 = dma.vmem_to_hbm [thread:$0]  %s379, 512, %s376, %s362
        $region44: #{tpu_custom_call.1} parent=31 // pred_fallthru
          _
      $region32: #{tpu_custom_call.1} parent=5 // pred_fallthru
        _
      %p382 = scmp.le.s32.totalorder 2, %s17
      // Predicated region
      $region45: #{tpu_custom_call.1} parent=5 // pred_check
        %p383 = pneg %p382
      $region46: #{tpu_custom_call.1} parent=5 // pred_check_branch
        %385 = sbr.rel (%p383) target = $region48
      $region47: #{tpu_custom_call.1} parent=5 // pred_region
        %s386 = ssub.s32 %s17, 2
        // Predicated region
        $region49: #{tpu_custom_call.1} parent=47 // pred_check
          %p387 = pneg %p130
        $region50: #{tpu_custom_call.1} parent=47 // pred_check_branch
          %389 = sbr.rel (%p387) target = $region52
        $region51: #{tpu_custom_call.1} parent=47 // pred_region
          %s390 = sand.u32 %s115, 1
          %s391 = scalar_lea.sflag [#allocation5], %s390
          %s392 = sand.u32 %s115, 1
          %s393 = smul.addr %s392, 32
          %s394 = scalar_lea.vmem [#allocation8], %s393
          %395 = dma.done %s391, 512
        $region52: #{tpu_custom_call.1} parent=47 // pred_fallthru
          _
      $region48: #{tpu_custom_call.1} parent=5 // pred_fallthru
        _
    $region6: #{tpu_custom_call.1} parent=1 // loop_footer
      %s21 = sadd.s32 1, %s17
    $region7: #{tpu_custom_call.1} parent=1 // loop_footer_branch
      %16 = sbr.rel target = $region3
    $region8: #{tpu_custom_call.1} parent=1 // loop_exit
      _
    %396 = vsyncpa [#allocation4], 1
    %s397 = scalar_lea.sflag [#allocation4], 1
    %398 = vsyncpa %s397, 1
    %399 = vsyncpa [#allocation5], 1
    %s400 = scalar_lea.sflag [#allocation5], 1
    %401 = vsyncpa %s400, 1
    %402 = vsyncpa [#allocation6], 1
    %s403 = scalar_lea.sflag [#allocation6], 1
    %404 = vsyncpa %s403, 1

</llo_original>
